<compile_context>
chip_gen: v6e
topology: v6e:2x2x1
jax: 0.10.0
libtpu: 0.0.40
codegen_flags: <defaults>
</compile_context>

<pallas_src>
import functools
import math

import jax
import jax.numpy as jnp
from jax.experimental import pallas as pl
from jax.experimental.pallas import tpu as pltpu

LANE = 128             # lane width of a vreg
SMALL_BATCH = 64       # below this, run a single grid step (per-step actor inference)
MAX_BATCH_TILE = 1024  # batch rows per grid step in the large-batch (rollout) regime


def _round_up(n, m):
    return ((n + m - 1) // m) * m


def fcac_kernel(x_ref, w1_ref, w2_ref, wh_ref, bias_ref, out_ref):
    """One fused MLP forward step on a (TB, in_dim) batch tile.

    bias_ref rows: 0 -> layer-1 bias, 1 -> layer-2 bias, 2 -> fused-head bias (f32).
    Weights/activations are bf16; every dot accumulates in f32 on the MXU; the single
    output store is lane-dense (P = multiple of 128) and cast to out_ref.dtype.
    """
    x = x_ref[...]
    b = bias_ref[...]

    # input layer + relu
    h = jnp.dot(x, w1_ref[...], preferred_element_type=jnp.float32) + b[0:1, :]
    h = jnp.maximum(h, 0.0).astype(x.dtype)

    # hidden layer + relu
    h = jnp.dot(h, w2_ref[...], preferred_element_type=jnp.float32) + b[1:2, :]
    h = jnp.maximum(h, 0.0).astype(x.dtype)

    # fused policy + value heads -> one lane-dense (TB, P) store
    out = jnp.dot(h, wh_ref[...], preferred_element_type=jnp.float32) + b[2:3, :]
    out_ref[...] = out.astype(out_ref.dtype)


def prepare_params(params, compute_dtype=jnp.bfloat16):
    """One-time packing: pad widths to 128 lanes, fuse policy/value heads, cast weights.

    Run this ONCE (outside the rollout loop); fcac_forward then does zero per-call
    parameter reshuffling.  Biases stay f32 (added to the f32 accumulator).
    """
    w1, b1, w2, b2, wp, bp, wv, bv = params
    in_dim, h1 = w1.shape
    h2 = w2.shape[1]
    out_dim = wp.shape[1]

    P = _round_up(max(h1, h2, out_dim + 1), LANE)
    f32 = jnp.float32

    w1p = jnp.zeros((in_dim, P), f32).at[:, :h1].set(w1).astype(compute_dtype)
    w2p = jnp.zeros((P, P), f32).at[:h1, :h2].set(w2).astype(compute_dtype)
    wh = jnp.concatenate([wp, wv], axis=1)                       # [h2, out_dim + 1]
    whp = jnp.zeros((P, P), f32).at[:h2, : out_dim + 1].set(wh).astype(compute_dtype)
    bh = jnp.concatenate([bp, bv], axis=1)
    bias_pack = (
        jnp.zeros((3, P), f32)
        .at[0, :h1].set(b1.reshape(-1))
        .at[1, :h2].set(b2.reshape(-1))
        .at[2, : out_dim + 1].set(bh.reshape(-1))
    )
    meta = {"in_dim": in_dim, "out_dim": out_dim, "padded_width": P}
    return (w1p, w2p, whp, bias_pack), meta


def fcac_forward(x, prepared, out_dim):
    """FCAC forward. x: [B, input_dim]. Returns (logits [B, out_dim], value [B, 1])."""
    w1p, w2p, whp, bias_pack = prepared
    B, in_dim = x.shape
    P = w2p.shape[1]
    compute_dtype = w1p.dtype
    x = x.astype(compute_dtype)

    # Batch tile: one block for tiny per-step batches; >= 2 grid steps for B > 64 so
    # both v7x TensorCores get work; capped at MAX_BATCH_TILE for rollout batches.
    if B <= SMALL_BATCH:
        TB = B
    else:
        TB = min(MAX_BATCH_TILE, _round_up(-(-B // 2), 8))
    grid = (pl.cdiv(B, TB),)

    fused = pl.pallas_call(
        fcac_kernel,
        out_shape=jax.ShapeDtypeStruct((B, P), compute_dtype),
        grid_spec=pltpu.PrefetchScalarGridSpec(
            num_scalar_prefetch=0,
            grid=grid,
            in_specs=[
                pl.BlockSpec((TB, in_dim), lambda i: (i, 0)),   # batch-tiled input
                pl.BlockSpec((in_dim, P), lambda i: (0, 0)),    # weights VMEM-resident
                pl.BlockSpec((P, P), lambda i: (0, 0)),
                pl.BlockSpec((P, P), lambda i: (0, 0)),
                pl.BlockSpec((3, P), lambda i: (0, 0)),         # packed biases (f32)
            ],
            out_specs=pl.BlockSpec((TB, P), lambda i: (i, 0)),  # lane-dense output
        ),
        compiler_params=pltpu.CompilerParams(
            dimension_semantics=("parallel",),  # shard batch tiles across TCs on v7x
        ),
    )(x, w1p, w2p, whp, bias_pack)

    # Module contract: return (logits, value).  (Downstream softmax/sampling could be
    # fused into the kernel for per-step inference; left out to match forward() exactly.)
    logits = fused[:, :out_dim]
    value = fused[:, out_dim : out_dim + 1]
    return logits, value


def init_linear(key, fan_in, fan_out):
    """PyTorch nn.Linear default init: U(-1/sqrt(fan_in), 1/sqrt(fan_in)).

    Weight returned already transposed to [fan_in, fan_out]; bias as [1, fan_out].
    """
    kw, kb = jax.random.split(key)
    bound = 1.0 / math.sqrt(fan_in)
    w = jax.random.uniform(kw, (fan_in, fan_out), jnp.float32, -bound, bound)
    b = jax.random.uniform(kb, (1, fan_out), jnp.float32, -bound, bound)
    return w, b


def make_params(key, input_dim, output_dim, hidden_dims=(32, 32)):
    # This kernel implements the default FCAC topology: input layer + exactly one
    # hidden layer (hidden_dims of length 2), matching the PyTorch module default.
    # TODO(synk): generalize the kernel body to arbitrary-depth hidden_dims.
    assert len(hidden_dims) == 2, "kernel supports hidden_dims of length 2"
    keys = jax.random.split(key, 4)
    w1, b1 = init_linear(keys[0], input_dim, hidden_dims[0])
    w2, b2 = init_linear(keys[1], hidden_dims[0], hidden_dims[1])
    wv, bv = init_linear(keys[2], hidden_dims[-1], 1)
    wp, bp = init_linear(keys[3], hidden_dims[-1], output_dim)
    return (w1, b1, w2, b2, wp, bp, wv, bv)


def fcac_reference(x, params):
    """Plain-JAX reference (f32 math) for correctness check."""
    w1, b1, w2, b2, wp, bp, wv, bv = params
    h = jnp.maximum(x @ w1 + b1, 0.0)
    h = jnp.maximum(h @ w2 + b2, 0.0)
    return h @ wp + bp, h @ wv + bv


def _quantize(a):
    """Round-trip through bf16 (what the kernel feeds the MXU) for a fair reference."""
    return a.astype(jnp.bfloat16).astype(jnp.float32)


def _check(x, params, prepared, out_dim, fwd):
    logits, value = fwd(x, prepared)
    logits = jax.block_until_ready(logits)
    value = jax.block_until_ready(value)

    w1, b1, w2, b2, wp, bp, wv, bv = params
    qparams = (_quantize(w1), b1, _quantize(w2), b2, _quantize(wp), bp, _quantize(wv), bv)
    ref_logits, ref_value = fcac_reference(_quantize(x), qparams)

    B = x.shape[0]
    assert logits.shape == (B, out_dim), logits.shape
    assert value.shape == (B, 1), value.shape
    assert jnp.allclose(logits.astype(jnp.float32), ref_logits, atol=2e-2, rtol=2e-2)
    assert jnp.allclose(value.astype(jnp.float32), ref_value, atol=2e-2, rtol=2e-2)


if __name__ == "__main__":
    key = jax.random.PRNGKey(0)
    k_params, k_x1, k_x2 = jax.random.split(key, 3)

    input_dim = 8        # small observation vector
    output_dim = 4       # number of discrete actions
    hidden_dims = (32, 32)

    params = make_params(k_params, input_dim, output_dim, hidden_dims)
    prepared, meta = prepare_params(params)          # one-time packing / padding / cast
    prepared = jax.block_until_ready(prepared)

    fwd = jax.jit(functools.partial(fcac_forward, out_dim=output_dim))

    # Per-step actor inference batch (single grid step).
    x_small = jax.random.normal(k_x1, (4, input_dim), dtype=jnp.float32)
    _check(x_small, params, prepared, output_dim, fwd)

    # Rollout-sized batch exercising the multi-step grid + ragged last tile.
    x_big = jax.random.normal(k_x2, (300, input_dim), dtype=jnp.float32)
    _check(x_big, params, prepared, output_dim, fwd)

    print("KERNEL_OK")
</pallas_src>

<mosaic_0001>
module attributes {stable_mosaic.version = 11 : i64} {
  func.func @fcac_kernel(%arg0: i32, %arg1: memref<4x8xbf16, #tpu.memory_space<vmem>>, %arg2: memref<8x128xbf16, #tpu.memory_space<vmem>>, %arg3: memref<128x128xbf16, #tpu.memory_space<vmem>>, %arg4: memref<128x128xbf16, #tpu.memory_space<vmem>>, %arg5: memref<3x128xf32, #tpu.memory_space<vmem>>, %arg6: memref<4x128xbf16, #tpu.memory_space<vmem>>) attributes {dimension_semantics = [#tpu.dimension_semantics<parallel>], iteration_bounds = array<i64: 1>, scalar_prefetch = 0 : i64, scratch_operands = 0 : i64, tpu.core_type = #tpu.core_type<tc>, window_params = [{transform_indices = @transform_0, window_bounds = array<i64: 4, 8>}, {pipeline_mode = #tpu.pipeline_mode<synchronous>, transform_indices = @transform_1, window_bounds = array<i64: 8, 128>}, {pipeline_mode = #tpu.pipeline_mode<synchronous>, transform_indices = @transform_2, window_bounds = array<i64: 128, 128>}, {pipeline_mode = #tpu.pipeline_mode<synchronous>, transform_indices = @transform_3, window_bounds = array<i64: 128, 128>}, {pipeline_mode = #tpu.pipeline_mode<synchronous>, transform_indices = @transform_4, window_bounds = array<i64: 3, 128>}, {transform_indices = @transform_5, window_bounds = array<i64: 4, 128>}]} {
    %c0 = arith.constant 0 : index
    %c0_0 = arith.constant 0 : index
    %0 = vector.load %arg1[%c0, %c0_0] : memref<4x8xbf16, #tpu.memory_space<vmem>>, vector<4x8xbf16>
    %c0_1 = arith.constant 0 : index
    %c0_2 = arith.constant 0 : index
    %1 = vector.load %arg5[%c0_1, %c0_2] : memref<3x128xf32, #tpu.memory_space<vmem>>, vector<3x128xf32>
    %c0_3 = arith.constant 0 : index
    %c0_4 = arith.constant 0 : index
    %2 = vector.load %arg2[%c0_3, %c0_4] : memref<8x128xbf16, #tpu.memory_space<vmem>>, vector<8x128xbf16>
    %cst = arith.constant dense<0.000000e+00> : vector<4x128xf32>
    %3 = tpu.matmul %0, %2, %cst {dimension_numbers = #tpu.dot_dimension_numbers<[1], [0], [0], [1], [0, 0, 1, 1], [], []>} : vector<4x8xbf16>, vector<8x128xbf16>, vector<4x128xf32> -> vector<4x128xf32>
    %4 = vector.extract_strided_slice %1 {offsets = [0, 0], sizes = [1, 128], strides = [1, 1]} : vector<3x128xf32> to vector<1x128xf32>
    %5 = vector.broadcast %4 : vector<1x128xf32> to vector<4x128xf32>
    %6 = arith.addf %3, %5 : vector<4x128xf32>
    %cst_5 = arith.constant 0.000000e+00 : f32
    %7 = vector.broadcast %cst_5 : f32 to vector<4x128xf32>
    %8 = arith.maximumf %6, %7 : vector<4x128xf32>
    %9 = arith.truncf %8 : vector<4x128xf32> to vector<4x128xbf16>
    %c0_6 = arith.constant 0 : index
    %c0_7 = arith.constant 0 : index
    %10 = vector.load %arg3[%c0_6, %c0_7] : memref<128x128xbf16, #tpu.memory_space<vmem>>, vector<128x128xbf16>
    %cst_8 = arith.constant dense<0.000000e+00> : vector<4x128xf32>
    %11 = tpu.matmul %9, %10, %cst_8 {dimension_numbers = #tpu.dot_dimension_numbers<[1], [0], [0], [1], [0, 0, 1, 1], [], []>} : vector<4x128xbf16>, vector<128x128xbf16>, vector<4x128xf32> -> vector<4x128xf32>
    %12 = vector.extract_strided_slice %1 {offsets = [1, 0], sizes = [1, 128], strides = [1, 1]} : vector<3x128xf32> to vector<1x128xf32>
    %13 = vector.broadcast %12 : vector<1x128xf32> to vector<4x128xf32>
    %14 = arith.addf %11, %13 : vector<4x128xf32>
    %cst_9 = arith.constant 0.000000e+00 : f32
    %15 = vector.broadcast %cst_9 : f32 to vector<4x128xf32>
    %16 = arith.maximumf %14, %15 : vector<4x128xf32>
    %17 = arith.truncf %16 : vector<4x128xf32> to vector<4x128xbf16>
    %c0_10 = arith.constant 0 : index
    %c0_11 = arith.constant 0 : index
    %18 = vector.load %arg4[%c0_10, %c0_11] : memref<128x128xbf16, #tpu.memory_space<vmem>>, vector<128x128xbf16>
    %cst_12 = arith.constant dense<0.000000e+00> : vector<4x128xf32>
    %19 = tpu.matmul %17, %18, %cst_12 {dimension_numbers = #tpu.dot_dimension_numbers<[1], [0], [0], [1], [0, 0, 1, 1], [], []>} : vector<4x128xbf16>, vector<128x128xbf16>, vector<4x128xf32> -> vector<4x128xf32>
    %20 = vector.extract_strided_slice %1 {offsets = [2, 0], sizes = [1, 128], strides = [1, 1]} : vector<3x128xf32> to vector<1x128xf32>
    %21 = vector.broadcast %20 : vector<1x128xf32> to vector<4x128xf32>
    %22 = arith.addf %19, %21 : vector<4x128xf32>
    %23 = arith.truncf %22 : vector<4x128xf32> to vector<4x128xbf16>
    %c0_13 = arith.constant 0 : index
    %c0_14 = arith.constant 0 : index
    %24 = vector.load %arg6[%c0_13, %c0_14] : memref<4x128xbf16, #tpu.memory_space<vmem>>, vector<4x128xbf16>
    tpu.vector_store %arg6[%c0_13, %c0_14], %23 {strides = array<i32>} : memref<4x128xbf16, #tpu.memory_space<vmem>>, vector<4x128xbf16>,
    return
  }
  func.func @transform_0(%arg0: i32) -> (i32, i32) {
    %c0_i32 = arith.constant 0 : i32
    %c0_i32_0 = arith.constant 0 : i32
    return %arg0, %c0_i32 : i32, i32
  }
  func.func @transform_1(%arg0: i32) -> (i32, i32) {
    %c0_i32 = arith.constant 0 : i32
    %c0_i32_0 = arith.constant 0 : i32
    %c0_i32_1 = arith.constant 0 : i32
    return %c0_i32, %c0_i32_0 : i32, i32
  }
  func.func @transform_2(%arg0: i32) -> (i32, i32) {
    %c0_i32 = arith.constant 0 : i32
    %c0_i32_0 = arith.constant 0 : i32
    %c0_i32_1 = arith.constant 0 : i32
    return %c0_i32, %c0_i32_0 : i32, i32
  }
  func.func @transform_3(%arg0: i32) -> (i32, i32) {
    %c0_i32 = arith.constant 0 : i32
    %c0_i32_0 = arith.constant 0 : i32
    %c0_i32_1 = arith.constant 0 : i32
    return %c0_i32, %c0_i32_0 : i32, i32
  }
  func.func @transform_4(%arg0: i32) -> (i32, i32) {
    %c0_i32 = arith.constant 0 : i32
    %c0_i32_0 = arith.constant 0 : i32
    %c0_i32_1 = arith.constant 0 : i32
    return %c0_i32, %c0_i32_0 : i32, i32
  }
  func.func @transform_5(%arg0: i32) -> (i32, i32) {
    %c0_i32 = arith.constant 0 : i32
    %c0_i32_0 = arith.constant 0 : i32
    return %arg0, %c0_i32 : i32, i32
  }
}

</mosaic_0001>

<llo_original>
// kernel: fcac_forward.1
$region0: #{fcac_forward.1}
  #allocation0 [shape = 'u32[]', space=smem, size = 0x4, offset = 0x4, fixed_abs, tag = 'smem constant byte address 0x4 - core index']
  #allocation1 [shape = 'u32[144,128]{1,0:T(1,128)}', space=vmem, size = 0x12000, scoped, tag = 'internal scratch']
  %s0 = inlined_call_operand.vmem [shape: bf16[4,8], index: 0, kind: input, shape index: {}]
  %s1 = inlined_call_operand.vmem [shape: bf16[8,128], index: 1, kind: input, shape index: {}]
  %s2 = inlined_call_operand.hbm [shape: bf16[128,128], index: 2, kind: input, shape index: {}]
  %s3 = inlined_call_operand.hbm [shape: bf16[128,128], index: 3, kind: input, shape index: {}]
  %s4 = inlined_call_operand.vmem [shape: f32[3,128], index: 4, kind: input, shape index: {}]
  %s5 = inlined_call_operand.vmem [shape: bf16[4,128], index: 5, kind: output, shape index: {}]
  %s6 = sld [smem:[#allocation0]]
  $region38: #{fcac_forward.1} parent=0
    _
  %s8 = ssub.s32 1, %s6
  %s9 = scalar_select 0, %s8, %s6
  $region1: #{fcac_forward.1} parent=0
    #allocation2 [shape = 'u8[32768]{0}', space=vmem, size = 0x8000, scoped, tag = 'input window, operand 2, single buffered']
    #allocation3 [shape = 's32[1]{0}', space=sflag, size = 0x4, scoped, tag = 'scoped memory for fcac_forward.1']
    #allocation4 [shape = 'u8[32768]{0}', space=vmem, size = 0x8000, scoped, tag = 'input window, operand 3, single buffered']
    #allocation5 [shape = 's32[1]{0}', space=sflag, size = 0x4, scoped, tag = 'scoped memory for fcac_forward.1']
    %10 = vsyncpa [#allocation3], 0
    %11 = vsyncpa [#allocation5], 0
    // Predicated region
    $region2: #{fcac_forward.1} parent=1 // pred_check
      _
    $region3: #{fcac_forward.1} parent=1 // pred_check_branch
      %13 = sbr.rel (0) target = $region5
    $region4: #{fcac_forward.1} parent=1 // pred_region
      _
    $region5: #{fcac_forward.1} parent=1 // pred_fallthru
      _
    // Predicated region
    $region6: #{fcac_forward.1} parent=1 // pred_check
      _
    $region7: #{fcac_forward.1} parent=1 // pred_check_branch
      %15 = sbr.rel (0) target = $region9
    $region8: #{fcac_forward.1} parent=1 // pred_region
      _
    $region9: #{fcac_forward.1} parent=1 // pred_fallthru
      _
    // Predicated region
    $region10: #{fcac_forward.1} parent=1 // pred_check
      _
    $region11: #{fcac_forward.1} parent=1 // pred_check_branch
      %17 = sbr.rel (0) target = $region13
    $region12: #{fcac_forward.1} parent=1 // pred_region
      %s19 = ssub.s32 1024, 1024
      %20 = vsyncadd [#allocation3], %s19
      %s21 = sshll.u32 [#allocation2], 4
      %s22 = int_to_ptr.vmem [resolvable:$true] %s21
      %27 = dma.hbm_to_vmem [thread:$0]  %s2, 1024, %s22, [#allocation3], 64, 64, 4
    $region13: #{fcac_forward.1} parent=1 // pred_fallthru
      _
    // Predicated region
    $region14: #{fcac_forward.1} parent=1 // pred_check
      _
    $region15: #{fcac_forward.1} parent=1 // pred_check_branch
      %29 = sbr.rel (0) target = $region17
    $region16: #{fcac_forward.1} parent=1 // pred_region
      %s31 = ssub.s32 1024, 1024
      %32 = vsyncadd [#allocation5], %s31
      %s33 = sshll.u32 [#allocation4], 4
      %s34 = int_to_ptr.vmem [resolvable:$true] %s33
      %39 = dma.hbm_to_vmem [thread:$0]  %s3, 1024, %s34, [#allocation5], 64, 64, 4
    $region17: #{fcac_forward.1} parent=1 // pred_fallthru
      _
    // Predicated region
    $region18: #{fcac_forward.1} parent=1 // pred_check
      _
    $region19: #{fcac_forward.1} parent=1 // pred_check_branch
      %41 = sbr.rel (0) target = $region21
    $region20: #{fcac_forward.1} parent=1 // pred_region
      _
    $region21: #{fcac_forward.1} parent=1 // pred_fallthru
      _
    // Predicated region
    $region22: #{fcac_forward.1} parent=1 // pred_check
      _
    $region23: #{fcac_forward.1} parent=1 // pred_check_branch
      %43 = sbr.rel (0) target = $region25
    $region24: #{fcac_forward.1} parent=1 // pred_region
      %44 = dma.done [#allocation3], 1024
    $region25: #{fcac_forward.1} parent=1 // pred_fallthru
      _
    // Predicated region
    $region26: #{fcac_forward.1} parent=1 // pred_check
      _
    $region27: #{fcac_forward.1} parent=1 // pred_check_branch
      %46 = sbr.rel (0) target = $region29
    $region28: #{fcac_forward.1} parent=1 // pred_region
      %47 = dma.done [#allocation5], 1024
    $region29: #{fcac_forward.1} parent=1 // pred_fallthru
      _
    %v49 = vld [vmem:[%s0] sm:$0x3]
    %v50 = vld [vmem:[%s4] sm:$0x7]
    %v51 = vld [vmem:[%s1] sm:$0xf]
    %v52 = vlaneseq
    %v53 = vshrl.u32 %v52, 7
    %v54 = vsub.s32 0, %v53
    %v55 = vrot.slane %v50, %v54
    %vm56 = vcmask 64512
    %v58 = vsel %vm56, %v49, 0
    %vm60 = vcmask 1043456
    %v62 = vsel %vm60, %v51, 0
    %64 = vmatprep.subr.bf16.mxu0 0
    %65 = vmatpush1.bf16.msra.mxu0 0
    %66 = vmatprep.subr.bf16.mxu0 0
    %67 = vmatpush1.bf16.msra.mxu0 0
    %68 = vmatprep.subr.bf16.mxu0 0
    %69 = vmatpush1.bf16.msra.mxu0 0
    %70 = vmatprep.subr.bf16.mxu0 0
    %71 = vmatpush1.bf16.msra.mxu0 0
    %72 = vmatprep.subr.bf16.mxu0 0
    %73 = vmatpush1.bf16.msra.mxu0 0
    %74 = vmatprep.subr.bf16.mxu0 0
    %75 = vmatpush1.bf16.msra.mxu0 0
    %76 = vmatprep.subr.bf16.mxu0 0
    %77 = vmatpush1.bf16.msra.mxu0 0
    %78 = vmatprep.subr.bf16.mxu0 0
    %79 = vmatpush1.bf16.msra.mxu0 %v62
    %80 = vmatprep.subr.bf16.mxu0 0
    %81 = vmatpush2.bf16.msra.mxu0 0
    %82 = vmatprep.subr.bf16.mxu0 0
    %83 = vmatpush2.bf16.msra.mxu0 0
    %84 = vmatprep.subr.bf16.mxu0 0
    %85 = vmatpush2.bf16.msra.mxu0 0
    %86 = vmatprep.subr.bf16.mxu0 0
    %87 = vmatpush2.bf16.msra.mxu0 0
    %88 = vmatprep.subr.bf16.mxu0 0
    %89 = vmatpush2.bf16.msra.mxu0 0
    %90 = vmatprep.subr.bf16.mxu0 0
    %91 = vmatpush2.bf16.msra.mxu0 0
    %92 = vmatprep.subr.bf16.mxu0 0
    %93 = vmatpush2.bf16.msra.mxu0 0
    %94 = vmatprep.subr.bf16.mxu0 0
    %95 = vmatpush2.bf16.msra.mxu0 0
    %96 = vmatprep.mubr.bf16.mxu0 0
    %97 = vmatmul.mubr.bf16.gmra.mxu0 %v58
    %v98 = vpop.f32.mrf.mxu0
    %v99 = vadd.f32 %v55, %v98
    %v100 = vpop.f32.mrf.mxu0
    %v101 = vpop.f32.mrf.mxu0
    %v102 = vpop.f32.mrf.mxu0
    %103 = vdwg.mxu0
    %v104 = vmax.f32 %v99, 0.0
    %v105 = vpack.c.bf16 %v104, %v104
    %v106 = vld [vmem:[#allocation2] sm:$0xf]
    %v107 = vld [vmem:[#allocation2 + $0x4] sm:$0xf]
    %v108 = vld [vmem:[#allocation2 + $0x8] sm:$0xf]
    %v109 = vld [vmem:[#allocation2 + $0xc] sm:$0xf]
    %v110 = vld [vmem:[#allocation2 + $0x10] sm:$0xf]
    %v111 = vld [vmem:[#allocation2 + $0x14] sm:$0xf]
    %v112 = vld [vmem:[#allocation2 + $0x18] sm:$0xf]
    %v113 = vld [vmem:[#allocation2 + $0x1c] sm:$0xf]
    %v114 = vld [vmem:[#allocation2 + $0x20] sm:$0xf]
    %v115 = vld [vmem:[#allocation2 + $0x24] sm:$0xf]
    %v116 = vld [vmem:[#allocation2 + $0x28] sm:$0xf]
    %v117 = vld [vmem:[#allocation2 + $0x2c] sm:$0xf]
    %v118 = vld [vmem:[#allocation2 + $0x30] sm:$0xf]
    %v119 = vld [vmem:[#allocation2 + $0x34] sm:$0xf]
    %v120 = vld [vmem:[#allocation2 + $0x38] sm:$0xf]
    %v121 = vld [vmem:[#allocation2 + $0x3c] sm:$0xf]
    %v122 = vlaneseq
    %v123 = vshrl.u32 %v122, 7
    %v124 = vsub.s32 1, %v123
    %v125 = vrot.slane %v50, %v124
    %v142 = vunpack.c.l.b16 %v106
    %v143 = vunpack.c.l.b16 %v107
    %v144 = vunpack.c.l.b16 %v108
    %v145 = vunpack.c.l.b16 %v109
    %v146 = vunpack.c.l.b16 %v110
    %v147 = vunpack.c.l.b16 %v111
    %v148 = vunpack.c.l.b16 %v112
    %v149 = vunpack.c.l.b16 %v113
    %v150 = vunpack.c.l.b16 %v114
    %v151 = vunpack.c.l.b16 %v115
    %v152 = vunpack.c.l.b16 %v116
    %v153 = vunpack.c.l.b16 %v117
    %v154 = vunpack.c.l.b16 %v118
    %v155 = vunpack.c.l.b16 %v119
    %v156 = vunpack.c.l.b16 %v120
    %v157 = vunpack.c.l.b16 %v121
    %v158 = vpack.c.b16 %v143, %v142
    %v159 = vpack.c.b16 %v145, %v144
    %v160 = vpack.c.b16 %v147, %v146
    %v161 = vpack.c.b16 %v149, %v148
    %v162 = vpack.c.b16 %v151, %v150
    %v163 = vpack.c.b16 %v153, %v152
    %v164 = vpack.c.b16 %v155, %v154
    %v165 = vpack.c.b16 %v157, %v156
    %174 = vmatprep.subr.bf16.mxu0 0
    %175 = vmatpush1.bf16.msra.mxu0 %v165
    %176 = vmatprep.subr.bf16.mxu0 0
    %177 = vmatpush1.bf16.msra.mxu0 %v164
    %178 = vmatprep.subr.bf16.mxu0 0
    %179 = vmatpush1.bf16.msra.mxu0 %v163
    %180 = vmatprep.subr.bf16.mxu0 0
    %181 = vmatpush1.bf16.msra.mxu0 %v162
    %182 = vmatprep.subr.bf16.mxu0 0
    %183 = vmatpush1.bf16.msra.mxu0 %v161
    %184 = vmatprep.subr.bf16.mxu0 0
    %185 = vmatpush1.bf16.msra.mxu0 %v160
    %186 = vmatprep.subr.bf16.mxu0 0
    %187 = vmatpush1.bf16.msra.mxu0 %v159
    %188 = vmatprep.subr.bf16.mxu0 0
    %189 = vmatpush1.bf16.msra.mxu0 %v158
    %190 = vmatprep.subr.bf16.mxu0 0
    %191 = vmatpush2.bf16.msra.mxu0 0
    %192 = vmatprep.subr.bf16.mxu0 0
    %193 = vmatpush2.bf16.msra.mxu0 0
    %194 = vmatprep.subr.bf16.mxu0 0
    %195 = vmatpush2.bf16.msra.mxu0 0
    %196 = vmatprep.subr.bf16.mxu0 0
    %197 = vmatpush2.bf16.msra.mxu0 0
    %198 = vmatprep.subr.bf16.mxu0 0
    %199 = vmatpush2.bf16.msra.mxu0 0
    %200 = vmatprep.subr.bf16.mxu0 0
    %201 = vmatpush2.bf16.msra.mxu0 0
    %202 = vmatprep.subr.bf16.mxu0 0
    %203 = vmatpush2.bf16.msra.mxu0 0
    %204 = vmatprep.subr.bf16.mxu0 0
    %205 = vmatpush2.bf16.msra.mxu0 0
    %206 = vmatprep.mubr.bf16.mxu0 0
    %207 = vmatmul.mubr.bf16.gmra.mxu0 %v105
    %v208 = vpop.f32.mrf.mxu0
    %v209 = vadd.f32 %v125, %v208
    %v210 = vpop.f32.mrf.mxu0
    %v211 = vpop.f32.mrf.mxu0
    %v212 = vpop.f32.mrf.mxu0
    %213 = vdwg.mxu0
    %v214 = vmax.f32 %v209, 0.0
    %v215 = vpack.c.bf16 %v214, %v214
    %v216 = vld [vmem:[#allocation4] sm:$0xf]
    %v217 = vld [vmem:[#allocation4 + $0x4] sm:$0xf]
    %v218 = vld [vmem:[#allocation4 + $0x8] sm:$0xf]
    %v219 = vld [vmem:[#allocation4 + $0xc] sm:$0xf]
    %v220 = vld [vmem:[#allocation4 + $0x10] sm:$0xf]
    %v221 = vld [vmem:[#allocation4 + $0x14] sm:$0xf]
    %v222 = vld [vmem:[#allocation4 + $0x18] sm:$0xf]
    %v223 = vld [vmem:[#allocation4 + $0x1c] sm:$0xf]
    %v224 = vld [vmem:[#allocation4 + $0x20] sm:$0xf]
    %v225 = vld [vmem:[#allocation4 + $0x24] sm:$0xf]
    %v226 = vld [vmem:[#allocation4 + $0x28] sm:$0xf]
    %v227 = vld [vmem:[#allocation4 + $0x2c] sm:$0xf]
    %v228 = vld [vmem:[#allocation4 + $0x30] sm:$0xf]
    %v229 = vld [vmem:[#allocation4 + $0x34] sm:$0xf]
    %v230 = vld [vmem:[#allocation4 + $0x38] sm:$0xf]
    %v231 = vld [vmem:[#allocation4 + $0x3c] sm:$0xf]
    %v232 = vlaneseq
    %v233 = vshrl.u32 %v232, 7
    %v234 = vsub.s32 2, %v233
    %v235 = vrot.slane %v50, %v234
    %v252 = vunpack.c.l.b16 %v216
    %v253 = vunpack.c.l.b16 %v217
    %v254 = vunpack.c.l.b16 %v218
    %v255 = vunpack.c.l.b16 %v219
    %v256 = vunpack.c.l.b16 %v220
    %v257 = vunpack.c.l.b16 %v221
    %v258 = vunpack.c.l.b16 %v222
    %v259 = vunpack.c.l.b16 %v223
    %v260 = vunpack.c.l.b16 %v224
    %v261 = vunpack.c.l.b16 %v225
    %v262 = vunpack.c.l.b16 %v226
    %v263 = vunpack.c.l.b16 %v227
    %v264 = vunpack.c.l.b16 %v228
    %v265 = vunpack.c.l.b16 %v229
    %v266 = vunpack.c.l.b16 %v230
    %v267 = vunpack.c.l.b16 %v231
    %v268 = vpack.c.b16 %v253, %v252
    %v269 = vpack.c.b16 %v255, %v254
    %v270 = vpack.c.b16 %v257, %v256
    %v271 = vpack.c.b16 %v259, %v258
    %v272 = vpack.c.b16 %v261, %v260
    %v273 = vpack.c.b16 %v263, %v262
    %v274 = vpack.c.b16 %v265, %v264
    %v275 = vpack.c.b16 %v267, %v266
    %284 = vmatprep.subr.bf16.mxu0 0
    %285 = vmatpush1.bf16.msra.mxu0 %v275
    %286 = vmatprep.subr.bf16.mxu0 0
    %287 = vmatpush1.bf16.msra.mxu0 %v274
    %288 = vmatprep.subr.bf16.mxu0 0
    %289 = vmatpush1.bf16.msra.mxu0 %v273
    %290 = vmatprep.subr.bf16.mxu0 0
    %291 = vmatpush1.bf16.msra.mxu0 %v272
    %292 = vmatprep.subr.bf16.mxu0 0
    %293 = vmatpush1.bf16.msra.mxu0 %v271
    %294 = vmatprep.subr.bf16.mxu0 0
    %295 = vmatpush1.bf16.msra.mxu0 %v270
    %296 = vmatprep.subr.bf16.mxu0 0
    %297 = vmatpush1.bf16.msra.mxu0 %v269
    %298 = vmatprep.subr.bf16.mxu0 0
    %299 = vmatpush1.bf16.msra.mxu0 %v268
    %300 = vmatprep.subr.bf16.mxu0 0
    %301 = vmatpush2.bf16.msra.mxu0 0
    %302 = vmatprep.subr.bf16.mxu0 0
    %303 = vmatpush2.bf16.msra.mxu0 0
    %304 = vmatprep.subr.bf16.mxu0 0
    %305 = vmatpush2.bf16.msra.mxu0 0
    %306 = vmatprep.subr.bf16.mxu0 0
    %307 = vmatpush2.bf16.msra.mxu0 0
    %308 = vmatprep.subr.bf16.mxu0 0
    %309 = vmatpush2.bf16.msra.mxu0 0
    %310 = vmatprep.subr.bf16.mxu0 0
    %311 = vmatpush2.bf16.msra.mxu0 0
    %312 = vmatprep.subr.bf16.mxu0 0
    %313 = vmatpush2.bf16.msra.mxu0 0
    %314 = vmatprep.subr.bf16.mxu0 0
    %315 = vmatpush2.bf16.msra.mxu0 0
    %316 = vmatprep.mubr.bf16.mxu0 0
    %317 = vmatmul.mubr.bf16.gmra.mxu0 %v215
    %v318 = vpop.f32.mrf.mxu0
    %v319 = vadd.f32 %v235, %v318
    %v320 = vpop.f32.mrf.mxu0
    %v321 = vpop.f32.mrf.mxu0
    %v322 = vpop.f32.mrf.mxu0
    %323 = vdwg.mxu0
    %v324 = vpack.c.bf16 %v319, %v319
    %325 = vst [vmem:[%s5] sm:$0x3] %v324
    // Predicated region
    $region30: #{fcac_forward.1} parent=1 // pred_check
      _
    $region31: #{fcac_forward.1} parent=1 // pred_check_branch
      %327 = sbr.rel (0) target = $region33
    $region32: #{fcac_forward.1} parent=1 // pred_region
      _
    $region33: #{fcac_forward.1} parent=1 // pred_fallthru
      _
    // Predicated region
    $region34: #{fcac_forward.1} parent=1 // pred_check
      _
    $region35: #{fcac_forward.1} parent=1 // pred_check_branch
      %329 = sbr.rel (0) target = $region37
    $region36: #{fcac_forward.1} parent=1 // pred_region
      _
    $region37: #{fcac_forward.1} parent=1 // pred_fallthru
      _
    %330 = vsyncpa [#allocation3], 1
    %331 = vsyncpa [#allocation5], 1

</llo_original>
